<compile_context>
chip_gen: v7x
topology: tpu7x:2x2x1
jax: 0.10.0
libtpu: 0.0.40
codegen_flags: <defaults>
</compile_context>

<pallas_src>
import functools

import jax
import jax.numpy as jnp
import numpy as np
from jax.experimental import pallas as pl
from jax.experimental.pallas import tpu as pltpu


def custom_loss_kernel(logits_ref, tgt_ref, fm_ref, out_ref, *, n_valid, p_pad):
    i = pl.program_id(0)
    t, _ = logits_ref.shape

    logits_nat = logits_ref[...]                            # [T, V] native dtype
    logits = logits_nat.astype(jnp.float32)                 # f32 for softmax path

    # Rows past the true N (ragged last tile) hold undefined data; mask them
    # with a select (NaN/inf safe) for both the CE and the bias contributions.
    row = jax.lax.broadcasted_iota(jnp.int32, (t, 1), 0) + i * t
    valid = row < n_valid                                    # [T, 1] bool

    # ---- Cross-entropy partial sum:  logsumexp(row) - logits[row, target] ---
    row_max = jnp.max(logits, axis=-1, keepdims=True)        # [T, 1]
    sumexp = jnp.sum(jnp.exp(logits - row_max), axis=-1, keepdims=True)
    lse = jnp.log(sumexp) + row_max                          # [T, 1]
    ce_row = lse - tgt_ref[...]                              # [T, 1]
    ce_sum = jnp.sum(jnp.where(valid, ce_row, 0.0))

    # ---- Bias partial sum: one fused MXU call; logits are the LHS so the big
    # [T, V] tile is not transposed/relaid-out.  Zero-padded one-hot rows give
    # m == 0 -> log((1+eps)/(1+eps)) == 0, so only row masking is needed.
    m_all = jax.lax.dot_general(
        logits_nat, fm_ref[...],
        dimension_numbers=(((1,), (1,)), ((), ())),
        preferred_element_type=jnp.float32)                  # [T, 2*p_pad]
    m1 = jnp.where(valid, m_all[:, :p_pad], 0.0)
    m2 = jnp.where(valid, m_all[:, p_pad:], 0.0)
    # NOTE: matches the PyTorch reference semantics; exp() may overflow for
    # |m| > ~88 exactly as the reference does.
    ratio = (jnp.exp(m1) + 1e-05) / (jnp.exp(m2) + 1e-05)
    bias_sum = jnp.sum(jnp.abs(jnp.log(ratio)))

    # Lane-dense partial-sum tile: lane 0 = CE sum, lane 1 = bias sum.
    lane = jax.lax.broadcasted_iota(jnp.int32, (1, 8, 128), 2)
    out_ref[...] = jnp.where(lane == 0, ce_sum,
                             jnp.where(lane == 1, bias_sum, 0.0))


def custom_loss(output, targets, lamda, f_onehot, m_onehot, *, tile_n=None):
    """output: [B, S, V] (or [N, V]) logits; targets: [N] int; f_onehot /
    m_onehot: [P, V] one-hot rows; lamda: python float."""
    v = output.shape[-1]
    flato = output.reshape(-1, v)                 # native dtype, no pad/copy
    n = flato.shape[0]
    p = f_onehot.shape[0]
    dtype = flato.dtype
    itemsize = jnp.dtype(dtype).itemsize
    subl = {4: 8, 2: 16, 1: 32}.get(itemsize, 8)  # sublane multiple per dtype

    # Hoisted O(N) gather of the target logits (replaces in-kernel iota/where).
    tgt_idx = targets.reshape(-1, 1).astype(jnp.int32)
    tgt_logit = jnp.take_along_axis(flato, tgt_idx, axis=1).astype(jnp.float32)

    # Packed [2*p_pad, V] one-hot operand in the logits' native dtype (0/1 are
    # exact in bf16; keeps the MXU on an un-mixed, native-rate path).
    fm_dtype = dtype if jnp.issubdtype(dtype, jnp.floating) else jnp.float32
    p_pad = -(-p // subl) * subl
    fm = jnp.zeros((2 * p_pad, v), fm_dtype)
    fm = fm.at[:p].set(f_onehot.astype(fm_dtype))
    fm = fm.at[p_pad:p_pad + p].set(m_onehot.astype(fm_dtype))
    fm_bytes = 2 * p_pad * v * jnp.dtype(fm_dtype).itemsize

    # ---- Tile sizing from the real per-generation VMEM capacity ------------
    try:
        vmem_cap = int(pltpu.get_tpu_info().vmem_capacity_bytes)
    except Exception:  # conservative fallback if the query is unavailable
        vmem_cap = 128 * 1024 * 1024
    budget = (vmem_cap * 3) // 4        # headroom: ~48 MiB v7x, ~96 MiB v5e/v6e
    # Per tile row: 2x native tile (double-buffered DMA) + ~6 f32 [T, V]
    # temporaries in the body (f32 cast, shifted, exp, dot/select staging).
    per_row = v * (2 * itemsize + 6 * 4) + 4 * 4
    if tile_n is None:
        avail = budget - 2 * fm_bytes - (1 << 20)
        tile_n = max(subl, min(2048, (avail // per_row) // subl * subl))
    tile_n = max(subl, (int(tile_n) // subl) * subl)
    tile_n = int(min(tile_n, -(-n // subl) * subl))
    num_tiles = -(-n // tile_n)
    # TODO(synk): for very large vocabularies where even tile_n == subl blows
    # the budget (V >~ 128-256k on v7x), add an inner "arbitrary" V-tile grid
    # axis with online-softmax scratch instead of a full-V row strip per block.

    vmem_need = (2 * tile_n * v * itemsize + 6 * tile_n * v * 4
                 + 2 * fm_bytes + 4 * tile_n * 4 + 2 * 8 * 128 * 4)
    vmem_limit = int(min(budget, max(2 * vmem_need, 16 * 1024 * 1024)))

    flops = int(2 * n * v * 2 * p_pad + 6 * n * v)
    transcendentals = int(n * v + 2 * p_pad * n)
    bytes_accessed = int(n * v * itemsize + n * 4 + fm_bytes
                         + num_tiles * 8 * 128 * 4)

    kernel = functools.partial(custom_loss_kernel, n_valid=n, p_pad=p_pad)

    def run(fm_spec):
        return pl.pallas_call(
            kernel,
            out_shape=jax.ShapeDtypeStruct((num_tiles, 8, 128), jnp.float32),
            grid=(num_tiles,),
            in_specs=[
                pl.BlockSpec((tile_n, v), lambda i: (i, 0)),   # logits (native)
                pl.BlockSpec((tile_n, 1), lambda i: (i, 0)),   # target logit
                fm_spec,                                       # packed one-hots
            ],
            out_specs=pl.BlockSpec((1, 8, 128), lambda i: (i, 0, 0)),
            compiler_params=pltpu.CompilerParams(
                dimension_semantics=("parallel",),
                vmem_limit_bytes=vmem_limit),
            cost_estimate=pl.CostEstimate(flops=flops,
                                          transcendentals=transcendentals,
                                          bytes_accessed=bytes_accessed),
        )(flato, tgt_logit, fm)

    # fm is grid-invariant: request a single buffer (halves its VMEM and HBM
    # cost). Fall back to default 2-deep pipelining if pipeline_mode/Buffered(1)
    # is rejected by this jax build.
    try:
        fm_spec = pl.BlockSpec((2 * p_pad, v), lambda i: (0, 0),
                               pipeline_mode=pl.Buffered(1))
        partials = run(fm_spec)
    except Exception:
        partials = run(pl.BlockSpec((2 * p_pad, v), lambda i: (0, 0)))

    ce = jnp.sum(partials[:, 0, 0]) / n
    bias = jnp.sum(partials[:, 0, 1]) / (p * n)
    return ce + lamda * bias


def custom_loss_ref(output, targets, lamda, f_onehot, m_onehot):
    """Pure-JAX reference of the PyTorch forward, for verification."""
    v = output.shape[-1]
    flato = output.reshape(-1, v).astype(jnp.float32)
    logp = jax.nn.log_softmax(flato, axis=-1)
    ce = -jnp.mean(jnp.take_along_axis(logp, targets.reshape(-1, 1), axis=-1))
    m1 = f_onehot @ flato.T
    m2 = m_onehot @ flato.T
    b = jnp.mean(jnp.abs(jnp.log((jnp.exp(m1) + 1e-05) /
                                 (jnp.exp(m2) + 1e-05))))
    return ce + lamda * b


if __name__ == "__main__":
    key = jax.random.PRNGKey(0)
    batch, seq, ntokens = 2, 9, 32        # N = 18 tokens, V = 32 -> exercises masking
    n_pairs = 4
    lamda = 0.5

    k1, k2 = jax.random.split(key)
    output = jax.random.normal(k1, (batch, seq, ntokens), dtype=jnp.float32)
    targets = jax.random.randint(k2, (batch * seq,), 0, ntokens,
                                 dtype=jnp.int32)

    female_idx = np.array([1, 5, 9, 13], dtype=np.int32)
    male_idx = np.array([2, 6, 10, 14], dtype=np.int32)
    f_onehot = jnp.asarray(np.eye(ntokens, dtype=np.float32)[female_idx])
    m_onehot = jnp.asarray(np.eye(ntokens, dtype=np.float32)[male_idx])

    ref = custom_loss_ref(output, targets, lamda, f_onehot, m_onehot)

    # Explicit small tile: grid of 3 row-tiles, last tile partially masked.
    loss = custom_loss(output, targets, lamda, f_onehot, m_onehot, tile_n=8)
    jax.block_until_ready(loss)
    np.testing.assert_allclose(np.asarray(loss), np.asarray(ref),
                               rtol=1e-5, atol=1e-5)

    # Auto tile-sizing path (single tile, ragged rows masked in-kernel).
    loss2 = custom_loss(output, targets, lamda, f_onehot, m_onehot)
    jax.block_until_ready(loss2)
    np.testing.assert_allclose(np.asarray(loss2), np.asarray(ref),
                               rtol=1e-5, atol=1e-5)

    print("KERNEL_OK")
</pallas_src>

<mosaic_0001>
module attributes {stable_mosaic.version = 11 : i64} {
  func.func @custom_loss_kernel(%arg0: i32, %arg1: memref<8x32xf32, #tpu.memory_space<vmem>>, %arg2: memref<8x1xf32, #tpu.memory_space<vmem>>, %arg3: memref<16x32xf32, #tpu.memory_space<vmem>>, %arg4: memref<1x8x128xf32, #tpu.memory_space<vmem>>) attributes {dimension_semantics = [#tpu.dimension_semantics<parallel>], iteration_bounds = array<i64: 3>, scalar_prefetch = 0 : i64, scratch_operands = 0 : i64, tpu.core_type = #tpu.core_type<tc>, window_params = [{transform_indices = @transform_0, window_bounds = array<i64: 8, 32>}, {transform_indices = @transform_1, window_bounds = array<i64: 8, 1>}, {pipeline_mode = #tpu.pipeline_mode<synchronous>, transform_indices = @transform_2, window_bounds = array<i64: 16, 32>}, {transform_indices = @transform_3, window_bounds = array<i64: 1, 8, 128>}]} {
    %c0 = arith.constant 0 : index
    %c0_0 = arith.constant 0 : index
    %0 = vector.load %arg1[%c0, %c0_0] : memref<8x32xf32, #tpu.memory_space<vmem>>, vector<8x32xf32>
    %1 = tpu.iota {dimensions = array<i32: 0>} : vector<8x1xi32>
    %c8_i32 = arith.constant 8 : i32
    %2 = arith.muli %arg0, %c8_i32 : i32
    %3 = vector.broadcast %2 : i32 to vector<8x1xi32>
    %4 = arith.addi %1, %3 : vector<8x1xi32>
    %c18_i32 = arith.constant 18 : i32
    %5 = vector.broadcast %c18_i32 : i32 to vector<8x1xi32>
    %6 = arith.cmpi slt, %4, %5 : vector<8x1xi32>
    %cst = arith.constant dense<0xFF800000> : vector<8xf32>
    %7 = vector.multi_reduction <maximumf>, %0, %cst [1] : vector<8x32xf32> to vector<8xf32>
    %8 = vector.shape_cast %7 : vector<8xf32> to vector<8x1xf32>
    %9 = vector.broadcast %8 : vector<8x1xf32> to vector<8x32xf32>
    %10 = arith.subf %0, %9 : vector<8x32xf32>
    %11 = math.exp %10 : vector<8x32xf32>
    %cst_1 = arith.constant dense<0.000000e+00> : vector<8xf32>
    %12 = vector.multi_reduction <add>, %11, %cst_1 [1] : vector<8x32xf32> to vector<8xf32>
    %13 = vector.shape_cast %12 : vector<8xf32> to vector<8x1xf32>
    %14 = math.log %13 : vector<8x1xf32>
    %15 = arith.addf %14, %8 : vector<8x1xf32>
    %c0_2 = arith.constant 0 : index
    %c0_3 = arith.constant 0 : index
    %16 = vector.load %arg2[%c0_2, %c0_3] : memref<8x1xf32, #tpu.memory_space<vmem>>, vector<8x1xf32>
    %17 = arith.subf %15, %16 : vector<8x1xf32>
    %cst_4 = arith.constant 0.000000e+00 : f32
    %18 = vector.broadcast %cst_4 : f32 to vector<8x1xf32>
    %19 = arith.select %6, %17, %18 : vector<8x1xi1>, vector<8x1xf32>
    %20 = vector.shape_cast %19 : vector<8x1xf32> to vector<1x8x1xf32>
    %cst_5 = arith.constant dense<0.000000e+00> : vector<1xf32>
    %21 = vector.multi_reduction <add>, %20, %cst_5 [1, 2] : vector<1x8x1xf32> to vector<1xf32>
    %22 = vector.shape_cast %21 : vector<1xf32> to vector<1x1x1xf32>
    %23 = vector.extract %22[0, 0, 0] : f32 from vector<1x1x1xf32>
    %c0_6 = arith.constant 0 : index
    %c0_7 = arith.constant 0 : index
    %24 = vector.load %arg3[%c0_6, %c0_7] : memref<16x32xf32, #tpu.memory_space<vmem>>, vector<16x32xf32>
    %cst_8 = arith.constant dense<0.000000e+00> : vector<8x16xf32>
    %25 = tpu.matmul %0, %24, %cst_8 {dimension_numbers = #tpu.dot_dimension_numbers<[1], [1], [0], [0], [0, 0, 1, 0], [], []>} : vector<8x32xf32>, vector<16x32xf32>, vector<8x16xf32> -> vector<8x16xf32>
    %26 = vector.extract_strided_slice %25 {offsets = [0, 0], sizes = [8, 8], strides = [1, 1]} : vector<8x16xf32> to vector<8x8xf32>
    %cst_9 = arith.constant 0.000000e+00 : f32
    %27 = vector.shape_cast %6 : vector<8x1xi1> to vector<8x1xi1>
    %28 = vector.broadcast %27 : vector<8x1xi1> to vector<8x8xi1>
    %29 = vector.broadcast %cst_9 : f32 to vector<8x8xf32>
    %30 = arith.select %28, %26, %29 : vector<8x8xi1>, vector<8x8xf32>
    %31 = vector.extract_strided_slice %25 {offsets = [0, 8], sizes = [8, 8], strides = [1, 1]} : vector<8x16xf32> to vector<8x8xf32>
    %cst_10 = arith.constant 0.000000e+00 : f32
    %32 = vector.shape_cast %6 : vector<8x1xi1> to vector<8x1xi1>
    %33 = vector.broadcast %32 : vector<8x1xi1> to vector<8x8xi1>
    %34 = vector.broadcast %cst_10 : f32 to vector<8x8xf32>
    %35 = arith.select %33, %31, %34 : vector<8x8xi1>, vector<8x8xf32>
    %36 = math.exp %30 : vector<8x8xf32>
    %cst_11 = arith.constant 9.99999974E-6 : f32
    %37 = vector.broadcast %cst_11 : f32 to vector<8x8xf32>
    %38 = arith.addf %36, %37 : vector<8x8xf32>
    %39 = math.exp %35 : vector<8x8xf32>
    %cst_12 = arith.constant 9.99999974E-6 : f32
    %40 = vector.broadcast %cst_12 : f32 to vector<8x8xf32>
    %41 = arith.addf %39, %40 : vector<8x8xf32>
    %42 = arith.divf %38, %41 : vector<8x8xf32>
    %43 = math.log %42 : vector<8x8xf32>
    %44 = math.absf %43 : vector<8x8xf32>
    %45 = vector.shape_cast %44 : vector<8x8xf32> to vector<1x8x8xf32>
    %cst_13 = arith.constant dense<0.000000e+00> : vector<1xf32>
    %46 = vector.multi_reduction <add>, %45, %cst_13 [1, 2] : vector<1x8x8xf32> to vector<1xf32>
    %47 = vector.shape_cast %46 : vector<1xf32> to vector<1x1x1xf32>
    %48 = vector.extract %47[0, 0, 0] : f32 from vector<1x1x1xf32>
    %49 = tpu.iota {dimensions = array<i32: 2>} : vector<1x8x128xi32>
    %c0_i32 = arith.constant 0 : i32
    %50 = vector.broadcast %c0_i32 : i32 to vector<1x8x128xi32>
    %51 = arith.cmpi eq, %49, %50 : vector<1x8x128xi32>
    %c1_i32 = arith.constant 1 : i32
    %52 = vector.broadcast %c1_i32 : i32 to vector<1x8x128xi32>
    %53 = arith.cmpi eq, %49, %52 : vector<1x8x128xi32>
    %cst_14 = arith.constant 0.000000e+00 : f32
    %54 = vector.broadcast %48 : f32 to vector<1x8x128xf32>
    %55 = vector.broadcast %cst_14 : f32 to vector<1x8x128xf32>
    %56 = arith.select %53, %54, %55 : vector<1x8x128xi1>, vector<1x8x128xf32>
    %57 = vector.broadcast %23 : f32 to vector<1x8x128xf32>
    %58 = arith.select %51, %57, %56 : vector<1x8x128xi1>, vector<1x8x128xf32>
    %c0_15 = arith.constant 0 : index
    %c0_16 = arith.constant 0 : index
    %c0_17 = arith.constant 0 : index
    %59 = vector.load %arg4[%c0_15, %c0_16, %c0_17] : memref<1x8x128xf32, #tpu.memory_space<vmem>>, vector<1x8x128xf32>
    tpu.vector_store %arg4[%c0_15, %c0_16, %c0_17], %58 {strides = array<i32>} : memref<1x8x128xf32, #tpu.memory_space<vmem>>, vector<1x8x128xf32>,
    return
  }
  func.func @transform_0(%arg0: i32) -> (i32, i32) {
    %c0_i32 = arith.constant 0 : i32
    %c0_i32_0 = arith.constant 0 : i32
    return %arg0, %c0_i32 : i32, i32
  }
  func.func @transform_1(%arg0: i32) -> (i32, i32) {
    %c0_i32 = arith.constant 0 : i32
    %c0_i32_0 = arith.constant 0 : i32
    return %arg0, %c0_i32 : i32, i32
  }
  func.func @transform_2(%arg0: i32) -> (i32, i32) {
    %c0_i32 = arith.constant 0 : i32
    %c0_i32_0 = arith.constant 0 : i32
    %c0_i32_1 = arith.constant 0 : i32
    return %c0_i32, %c0_i32_0 : i32, i32
  }
  func.func @transform_3(%arg0: i32) -> (i32, i32, i32) {
    %c0_i32 = arith.constant 0 : i32
    %c0_i32_0 = arith.constant 0 : i32
    %c0_i32_1 = arith.constant 0 : i32
    return %arg0, %c0_i32, %c0_i32_0 : i32, i32, i32
  }
}

module attributes {stable_mosaic.version = 11 : i64} {
  func.func @custom_loss_kernel(%arg0: i32, %arg1: memref<8x32xf32, #tpu.memory_space<vmem>>, %arg2: memref<8x1xf32, #tpu.memory_space<vmem>>, %arg3: memref<16x32xf32, #tpu.memory_space<vmem>>, %arg4: memref<1x8x128xf32, #tpu.memory_space<vmem>>) attributes {dimension_semantics = [#tpu.dimension_semantics<parallel>], iteration_bounds = array<i64: 3>, scalar_prefetch = 0 : i64, scratch_operands = 0 : i64, tpu.core_type = #tpu.core_type<tc>, window_params = [{transform_indices = @transform_0, window_bounds = array<i64: 8, 32>}, {transform_indices = @transform_1, window_bounds = array<i64: 8, 1>}, {pipeline_mode = #tpu.pipeline_mode<synchronous>, transform_indices = @transform_2, window_bounds = array<i64: 16, 32>}, {transform_indices = @transform_3, window_bounds = array<i64: 1, 8, 128>}]} {
    %c0 = arith.constant 0 : index
    %c0_0 = arith.constant 0 : index
    %0 = vector.load %arg1[%c0, %c0_0] : memref<8x32xf32, #tpu.memory_space<vmem>>, vector<8x32xf32>
    %1 = tpu.iota {dimensions = array<i32: 0>} : vector<8x1xi32>
    %c8_i32 = arith.constant 8 : i32
    %2 = arith.muli %arg0, %c8_i32 : i32
    %3 = vector.broadcast %2 : i32 to vector<8x1xi32>
    %4 = arith.addi %1, %3 : vector<8x1xi32>
    %c18_i32 = arith.constant 18 : i32
    %5 = vector.broadcast %c18_i32 : i32 to vector<8x1xi32>
    %6 = arith.cmpi slt, %4, %5 : vector<8x1xi32>
    %cst = arith.constant dense<0xFF800000> : vector<8xf32>
    %7 = vector.multi_reduction <maximumf>, %0, %cst [1] : vector<8x32xf32> to vector<8xf32>
    %8 = vector.shape_cast %7 : vector<8xf32> to vector<8x1xf32>
    %9 = vector.broadcast %8 : vector<8x1xf32> to vector<8x32xf32>
    %10 = arith.subf %0, %9 : vector<8x32xf32>
    %11 = math.exp %10 : vector<8x32xf32>
    %cst_1 = arith.constant dense<0.000000e+00> : vector<8xf32>
    %12 = vector.multi_reduction <add>, %11, %cst_1 [1] : vector<8x32xf32> to vector<8xf32>
    %13 = vector.shape_cast %12 : vector<8xf32> to vector<8x1xf32>
    %14 = math.log %13 : vector<8x1xf32>
    %15 = arith.addf %14, %8 : vector<8x1xf32>
    %c0_2 = arith.constant 0 : index
    %c0_3 = arith.constant 0 : index
    %16 = vector.load %arg2[%c0_2, %c0_3] : memref<8x1xf32, #tpu.memory_space<vmem>>, vector<8x1xf32>
    %17 = arith.subf %15, %16 : vector<8x1xf32>
    %cst_4 = arith.constant 0.000000e+00 : f32
    %18 = vector.broadcast %cst_4 : f32 to vector<8x1xf32>
    %19 = arith.select %6, %17, %18 : vector<8x1xi1>, vector<8x1xf32>
    %20 = vector.shape_cast %19 : vector<8x1xf32> to vector<1x8x1xf32>
    %cst_5 = arith.constant dense<0.000000e+00> : vector<1xf32>
    %21 = vector.multi_reduction <add>, %20, %cst_5 [1, 2] : vector<1x8x1xf32> to vector<1xf32>
    %22 = vector.shape_cast %21 : vector<1xf32> to vector<1x1x1xf32>
    %23 = vector.extract %22[0, 0, 0] : f32 from vector<1x1x1xf32>
    %c0_6 = arith.constant 0 : index
    %c0_7 = arith.constant 0 : index
    %24 = vector.load %arg3[%c0_6, %c0_7] : memref<16x32xf32, #tpu.memory_space<vmem>>, vector<16x32xf32>
    %cst_8 = arith.constant dense<0.000000e+00> : vector<8x16xf32>
    %25 = tpu.matmul %0, %24, %cst_8 {dimension_numbers = #tpu.dot_dimension_numbers<[1], [1], [0], [0], [0, 0, 1, 0], [], []>} : vector<8x32xf32>, vector<16x32xf32>, vector<8x16xf32> -> vector<8x16xf32>
    %26 = vector.extract_strided_slice %25 {offsets = [0, 0], sizes = [8, 8], strides = [1, 1]} : vector<8x16xf32> to vector<8x8xf32>
    %cst_9 = arith.constant 0.000000e+00 : f32
    %27 = vector.shape_cast %6 : vector<8x1xi1> to vector<8x1xi1>
    %28 = vector.broadcast %27 : vector<8x1xi1> to vector<8x8xi1>
    %29 = vector.broadcast %cst_9 : f32 to vector<8x8xf32>
    %30 = arith.select %28, %26, %29 : vector<8x8xi1>, vector<8x8xf32>
    %31 = vector.extract_strided_slice %25 {offsets = [0, 8], sizes = [8, 8], strides = [1, 1]} : vector<8x16xf32> to vector<8x8xf32>
    %cst_10 = arith.constant 0.000000e+00 : f32
    %32 = vector.shape_cast %6 : vector<8x1xi1> to vector<8x1xi1>
    %33 = vector.broadcast %32 : vector<8x1xi1> to vector<8x8xi1>
    %34 = vector.broadcast %cst_10 : f32 to vector<8x8xf32>
    %35 = arith.select %33, %31, %34 : vector<8x8xi1>, vector<8x8xf32>
    %36 = math.exp %30 : vector<8x8xf32>
    %cst_11 = arith.constant 9.99999974E-6 : f32
    %37 = vector.broadcast %cst_11 : f32 to vector<8x8xf32>
    %38 = arith.addf %36, %37 : vector<8x8xf32>
    %39 = math.exp %35 : vector<8x8xf32>
    %cst_12 = arith.constant 9.99999974E-6 : f32
    %40 = vector.broadcast %cst_12 : f32 to vector<8x8xf32>
    %41 = arith.addf %39, %40 : vector<8x8xf32>
    %42 = arith.divf %38, %41 : vector<8x8xf32>
    %43 = math.log %42 : vector<8x8xf32>
    %44 = math.absf %43 : vector<8x8xf32>
    %45 = vector.shape_cast %44 : vector<8x8xf32> to vector<1x8x8xf32>
    %cst_13 = arith.constant dense<0.000000e+00> : vector<1xf32>
    %46 = vector.multi_reduction <add>, %45, %cst_13 [1, 2] : vector<1x8x8xf32> to vector<1xf32>
    %47 = vector.shape_cast %46 : vector<1xf32> to vector<1x1x1xf32>
    %48 = vector.extract %47[0, 0, 0] : f32 from vector<1x1x1xf32>
    %49 = tpu.iota {dimensions = array<i32: 2>} : vector<1x8x128xi32>
    %c0_i32 = arith.constant 0 : i32
    %50 = vector.broadcast %c0_i32 : i32 to vector<1x8x128xi32>
    %51 = arith.cmpi eq, %49, %50 : vector<1x8x128xi32>
    %c1_i32 = arith.constant 1 : i32
    %52 = vector.broadcast %c1_i32 : i32 to vector<1x8x128xi32>
    %53 = arith.cmpi eq, %49, %52 : vector<1x8x128xi32>
    %cst_14 = arith.constant 0.000000e+00 : f32
    %54 = vector.broadcast %48 : f32 to vector<1x8x128xf32>
    %55 = vector.broadcast %cst_14 : f32 to vector<1x8x128xf32>
    %56 = arith.select %53, %54, %55 : vector<1x8x128xi1>, vector<1x8x128xf32>
    %57 = vector.broadcast %23 : f32 to vector<1x8x128xf32>
    %58 = arith.select %51, %57, %56 : vector<1x8x128xi1>, vector<1x8x128xf32>
    %c0_15 = arith.constant 0 : index
    %c0_16 = arith.constant 0 : index
    %c0_17 = arith.constant 0 : index
    %59 = vector.load %arg4[%c0_15, %c0_16, %c0_17] : memref<1x8x128xf32, #tpu.memory_space<vmem>>, vector<1x8x128xf32>
    tpu.vector_store %arg4[%c0_15, %c0_16, %c0_17], %58 {strides = array<i32>} : memref<1x8x128xf32, #tpu.memory_space<vmem>>, vector<1x8x128xf32>,
    return
  }
  func.func @transform_0(%arg0: i32) -> (i32, i32) {
    %c0_i32 = arith.constant 0 : i32
    %c0_i32_0 = arith.constant 0 : i32
    return %arg0, %c0_i32 : i32, i32
  }
  func.func @transform_1(%arg0: i32) -> (i32, i32) {
    %c0_i32 = arith.constant 0 : i32
    %c0_i32_0 = arith.constant 0 : i32
    return %arg0, %c0_i32 : i32, i32
  }
  func.func @transform_2(%arg0: i32) -> (i32, i32) {
    %c0_i32 = arith.constant 0 : i32
    %c0_i32_0 = arith.constant 0 : i32
    %c0_i32_1 = arith.constant 0 : i32
    return %c0_i32, %c0_i32_0 : i32, i32
  }
  func.func @transform_3(%arg0: i32) -> (i32, i32, i32) {
    %c0_i32 = arith.constant 0 : i32
    %c0_i32_0 = arith.constant 0 : i32
    %c0_i32_1 = arith.constant 0 : i32
    return %arg0, %c0_i32, %c0_i32_0 : i32, i32, i32
  }
}

</mosaic_0001>

<llo_original>
// kernel: tpu_custom_call.1
$region0: #{tpu_custom_call.1}
  #allocation0 [shape = 'u32[]', space=smem, size = 0x4, offset = 0x4, fixed_abs, tag = 'smem constant byte address 0x4 - core index']
  #allocation1 [shape = 'u32[144,128]{1,0:T(1,128)}', space=vmem, size = 0x12000, scoped, tag = 'internal scratch']
  %s0 = inlined_call_operand.vmem [shape: f32[18,32], index: 0, kind: input, shape index: {}]
  %s1 = inlined_call_operand.vmem [shape: f32[18,1], index: 1, kind: input, shape index: {}]
  %s2 = inlined_call_operand.hbm [shape: f32[16,32], index: 2, kind: input, shape index: {}]
  %s3 = inlined_call_operand.hbm [shape: f32[3,8,128], index: 3, kind: output, shape index: {}]
  %s4 = sld [smem:[#allocation0]]
  $region49: #{tpu_custom_call.1} parent=0
    _
  %s6 = ssub.s32 1, %s4
  %s7 = scalar_select 0, %s6, %s4
  $region1: #{tpu_custom_call.1} parent=0
    #allocation2 [shape = 'u8[8192]{0}', space=vmem, size = 0x2000, scoped, tag = 'input window, operand 2, single buffered']
    #allocation3 [shape = 's32[2]{0}', space=sflag, size = 0x8, scoped, tag = 'scoped memory for tpu_custom_call.1']
    #allocation4 [shape = 's32[2]{0}', space=sflag, size = 0x8, scoped, tag = 'scoped memory for tpu_custom_call.1']
    #allocation5 [shape = 'u8[8192]{0}', space=vmem, size = 0x2000, scoped, tag = 'output window, operand 0']
    %8 = vsyncpa [#allocation3], 0
    %9 = vsyncpa [#allocation4], 0
    %s10 = scalar_lea.sflag [#allocation4], 1
    %11 = vsyncpa %s10, 0
    loop: start=0, step=1, limit=5
    $region2: #{tpu_custom_call.1} parent=1 // loop_pre_header
      _
    $region3: #{tpu_custom_call.1} parent=1 // loop_header
      %s13 = sphi 0, %s17
      %p14 = scmp.ge.s32.totalorder %s13, 5
      %s23 = sphi 0, %s25
      %s26 = sphi 0, %s23
      %s27 = sphi 0, %s26
      %s43 = sphi 0, %s27
      %s49 = sphi 0, %s51
      %s52 = sphi 0, %s49
      %s53 = sphi 0, %s52
      %s69 = sphi 0, %s53
      %s73 = sphi 0, %s73
      %s75 = sphi 0, %s73
      %s76 = sphi 0, %s75
      %s90 = sphi 0, %s76
      %s96 = sphi 0, %s98
      %s99 = sphi 0, %s96
      %s100 = sphi 0, %s99
      %s116 = sphi 0, %s100
    $region4: #{tpu_custom_call.1} parent=1 // loop_header_branch
      %16 = sbr.rel (%p14) target = $region8
    $region5: #{tpu_custom_call.1} parent=1 // loop_body
      %s18 = ssub.s32 %s13, 1
      %s19 = ssub.s32 %s13, 2
      %s20 = sadd.s32 %s13, 1
      %s21 = ssub.s32 %s13, %s20
      %p22 = scmp.eq.s32.totalorder %s21, 0
      %s24 = sadd.s32 %s23, 1
      %s25 = scalar_select %p22, %s23, %s24
      %p28 = pneg %p22
      %p29 = scmp.eq.s32.totalorder %s13, 2
      %p30 = por %p28, %p29
      %p31 = scmp.ne.s32.totalorder %s23, %s26
      %p32 = scmp.eq.s32.totalorder %s13, 0
      %p33 = por %p31, %p32
      %p34 = scmp.ne.s32.totalorder %s23, %s26
      %p35 = scmp.eq.s32.totalorder %s18, 2
      %p36 = por %p34, %p35
      %p37 = scmp.ne.s32.totalorder %s26, %s27
      %p38 = scmp.eq.s32.totalorder %s18, 0
      %p39 = por %p37, %p38
      %p40 = scmp.ne.s32.totalorder %s26, %s27
      %p41 = scmp.eq.s32.totalorder %s19, 2
      %p42 = por %p40, %p41
      %p44 = scmp.ne.s32.totalorder %s27, %s43
      %p45 = scmp.eq.s32.totalorder %s19, 0
      %p46 = por %p44, %p45
      %s47 = ssub.s32 %s13, %s20
      %p48 = scmp.eq.s32.totalorder %s47, 0
      %s50 = sadd.s32 %s49, 1
      %s51 = scalar_select %p48, %s49, %s50
      %p54 = pneg %p48
      %p55 = scmp.eq.s32.totalorder %s13, 2
      %p56 = por %p54, %p55
      %p57 = scmp.ne.s32.totalorder %s49, %s52
      %p58 = scmp.eq.s32.totalorder %s13, 0
      %p59 = por %p57, %p58
      %p60 = scmp.ne.s32.totalorder %s49, %s52
      %p61 = scmp.eq.s32.totalorder %s18, 2
      %p62 = por %p60, %p61
      %p63 = scmp.ne.s32.totalorder %s52, %s53
      %p64 = scmp.eq.s32.totalorder %s18, 0
      %p65 = por %p63, %p64
      %p66 = scmp.ne.s32.totalorder %s52, %s53
      %p67 = scmp.eq.s32.totalorder %s19, 2
      %p68 = por %p66, %p67
      %p70 = scmp.ne.s32.totalorder %s53, %s69
      %p71 = scmp.eq.s32.totalorder %s19, 0
      %p72 = por %p70, %p71
      %s74 = sadd.s32 %s73, 1
      %p77 = scmp.eq.s32.totalorder %s13, 2
      %p78 = scmp.ne.s32.totalorder %s73, %s75
      %p79 = scmp.eq.s32.totalorder %s13, 0
      %p80 = por %p78, %p79
      %p81 = scmp.ne.s32.totalorder %s73, %s75
      %p82 = scmp.eq.s32.totalorder %s18, 2
      %p83 = por %p81, %p82
      %p84 = scmp.ne.s32.totalorder %s75, %s76
      %p85 = scmp.eq.s32.totalorder %s18, 0
      %p86 = por %p84, %p85
      %p87 = scmp.ne.s32.totalorder %s75, %s76
      %p88 = scmp.eq.s32.totalorder %s19, 2
      %p89 = por %p87, %p88
      %p91 = scmp.ne.s32.totalorder %s76, %s90
      %p92 = scmp.eq.s32.totalorder %s19, 0
      %p93 = por %p91, %p92
      %s94 = ssub.s32 %s13, %s20
      %p95 = scmp.eq.s32.totalorder %s94, 0
      %s97 = sadd.s32 %s96, 1
      %s98 = scalar_select %p95, %s96, %s97
      %p101 = pneg %p95
      %p102 = scmp.eq.s32.totalorder %s13, 2
      %p103 = por %p101, %p102
      %p104 = scmp.ne.s32.totalorder %s96, %s99
      %p105 = scmp.eq.s32.totalorder %s13, 0
      %p106 = por %p104, %p105
      %p107 = scmp.ne.s32.totalorder %s96, %s99
      %p108 = scmp.eq.s32.totalorder %s18, 2
      %p109 = por %p107, %p108
      %p110 = scmp.ne.s32.totalorder %s99, %s100
      %p111 = scmp.eq.s32.totalorder %s18, 0
      %p112 = por %p110, %p111
      %p113 = scmp.ne.s32.totalorder %s99, %s100
      %p114 = scmp.eq.s32.totalorder %s19, 2
      %p115 = por %p113, %p114
      %p117 = scmp.ne.s32.totalorder %s100, %s116
      %p118 = scmp.eq.s32.totalorder %s19, 0
      %p119 = por %p117, %p118
      %p120 = scmp.le.s32.totalorder 1, %s13
      %p121 = scmp.lt.s32.totalorder %s13, 4
      %p122 = pnand %p120, %p121
      %p123 = pneg %p122
      // Predicated region
      $region9: #{tpu_custom_call.1} parent=5 // pred_check
        _
      $region10: #{tpu_custom_call.1} parent=5 // pred_check_branch
        %125 = sbr.rel (%p122) target = $region12
      $region11: #{tpu_custom_call.1} parent=5 // pred_region
        %s126 = ssub.s32 %s13, 1
        // Predicated region
        $region13: #{tpu_custom_call.1} parent=11 // pred_check
          %p127 = pneg %p86
        $region14: #{tpu_custom_call.1} parent=11 // pred_check_branch
          %129 = sbr.rel (%p127) target = $region16
        $region15: #{tpu_custom_call.1} parent=11 // pred_region
          %s131 = ssub.s32 256, 256
          %132 = vsyncadd [#allocation3], %s131
          %s133 = sshll.u32 [#allocation2], 4
          %s134 = int_to_ptr.vmem [resolvable:$true] %s133
          %139 = dma.hbm_to_vmem [thread:$0]  %s2, 256, %s134, [#allocation3], 128, 128, 8
        $region16: #{tpu_custom_call.1} parent=11 // pred_fallthru
          _
      $region12: #{tpu_custom_call.1} parent=5 // pred_fallthru
        _
      %p140 = scmp.lt.s32.totalorder %s13, 3
      // Predicated region
      $region17: #{tpu_custom_call.1} parent=5 // pred_check
        %p141 = pneg %p140
      $region18: #{tpu_custom_call.1} parent=5 // pred_check_branch
        %143 = sbr.rel (%p141) target = $region20
      $region19: #{tpu_custom_call.1} parent=5 // pred_region
        // Predicated region
        $region21: #{tpu_custom_call.1} parent=19 // pred_check
          %p144 = pneg %p33
        $region22: #{tpu_custom_call.1} parent=19 // pred_check_branch
          %146 = sbr.rel (%p144) target = $region24
        $region23: #{tpu_custom_call.1} parent=19 // pred_region
          %p147 = scmp.lt.s32.totalorder %s13, 2
          %s148 = scalar_select %p147, %s13, 2
          %s149 = smul.addr %s148, 8
          %s150 = scalar_lea.vmem %s0, %s149
        $region24: #{tpu_custom_call.1} parent=19 // pred_fallthru
          _
        // Predicated region
        $region25: #{tpu_custom_call.1} parent=19 // pred_check
          %p151 = pneg %p59
        $region26: #{tpu_custom_call.1} parent=19 // pred_check_branch
          %153 = sbr.rel (%p151) target = $region28
        $region27: #{tpu_custom_call.1} parent=19 // pred_region
          %p154 = scmp.lt.s32.totalorder %s13, 2
          %s155 = scalar_select %p154, %s13, 2
          %s156 = smul.addr %s155, 8
          %s157 = scalar_lea.vmem %s1, %s156
        $region28: #{tpu_custom_call.1} parent=19 // pred_fallthru
          _
      $region20: #{tpu_custom_call.1} parent=5 // pred_fallthru
        _
      %p158 = scmp.le.s32.totalorder 1, %s13
      %p159 = scmp.lt.s32.totalorder %s13, 4
      %p160 = pnand %p158, %p159
      %p161 = pneg %p160
      // Predicated region
      $region29: #{tpu_custom_call.1} parent=5 // pred_check
        _
      $region30: #{tpu_custom_call.1} parent=5 // pred_check_branch
        %163 = sbr.rel (%p160) target = $region32
      $region31: #{tpu_custom_call.1} parent=5 // pred_region
        %s164 = ssub.s32 %s13, 1
        // Predicated region
        $region33: #{tpu_custom_call.1} parent=31 // pred_check
          %p165 = pneg %p86
        $region34: #{tpu_custom_call.1} parent=31 // pred_check_branch
          %167 = sbr.rel (%p165) target = $region36
        $region35: #{tpu_custom_call.1} parent=31 // pred_region
          %168 = dma.done [#allocation3], 256
        $region36: #{tpu_custom_call.1} parent=31 // pred_fallthru
          _
        %p169 = scmp.lt.s32.totalorder %s18, 2
        %s170 = scalar_select %p169, %s18, 2
        %s171 = smul.addr %s170, 8
        %s172 = scalar_lea.vmem %s0, %s171
        %p173 = pneg %p39
        %p174 = pneg %p36
        %p175 = scmp.lt.s32.totalorder %s18, 2
        %s176 = scalar_select %p175, %s18, 2
        %s177 = smul.addr %s176, 8
        %s178 = scalar_lea.vmem %s1, %s177
        %p179 = pneg %p65
        %p180 = pneg %p62
        %p181 = pneg %p86
        %p182 = pneg %p83
        %p183 = pneg %p112
        %p184 = pneg %p109
        %s185 = sand.u32 %s99, 1
        %s186 = scalar_lea.sflag [#allocation4], %s185
        %s187 = sand.u32 %s99, 1
        %s188 = smul.addr %s187, 8
        %s189 = scalar_lea.vmem [#allocation5], %s188
        %p190 = scmp.lt.s32.totalorder %s18, 2
        %s191 = scalar_select %p190, %s18, 2
        %s192 = smul.addr %s191, 8
        %s193 = scalar_lea.vmem %s0, %s192
        %p194 = scmp.lt.s32.totalorder %s18, 2
        %s195 = scalar_select %p194, %s18, 2
        %s196 = smul.addr %s195, 8
        %s197 = scalar_lea.vmem %s1, %s196
        %v198 = vld [vmem:[%s193] sm:$0xff]
        %v199 = vlaneseq
        %v200 = vshrl.u32 %v199, 7
        %s201 = smul.u32 %s18, 8
        %v202 = vstv %s201
        %v203 = vadd.s32 %v200, %v202
        %vm204 = vcmp.lt.s32.totalorder %v203, 18
        %vm205 = vcmask 261120
        %v206 = vsel %vm205, %v198, -inf
        %207 = vmax.xlane.f32.xlu0 %v206
        %v208 = vpop.xlane.xlu0 %207
        %v209 = vsub.f32 %v198, %v208
        %v210 = vmul.f32 %v209, 1.442695
        %v211 = vpow.pop %v210
        %v212 = vsel %vm205, %v211, 0.0
        %213 = vadd.xlane.f32.xlu0 %v212
        %v214 = vpop.xlane.xlu0 %213
        %v215 = vlog2.pop %v214
        %v216 = vmul.f32 %v215, 0.6931472
        %v217 = vadd.f32 %v216, %v208
        %v218 = vld [vmem:[%s197] sm:$0xff]
        %v219 = vsub.f32 %v217, %v218
        %v220 = vsel %vm204, %v219, 0.0
        %vm221 = vcmask 7168
        %v222 = vsel %vm221, %v220, 0.0
        %223 = vadd.xlane.f32.xlu0 %v222
        %v224 = vpop.xlane.xlu0 %223
        %v225 = vrot.slane %v224, 4
        %v226 = vadd.f32 %v224, %v225
        %v227 = vrot.slane %v226, 2
        %v228 = vadd.f32 %v226, %v227
        %v229 = vrot.slane %v228, 1
        %v230 = vadd.f32 %v228, %v229
        %s231 = vtos %v230
        %v232 = vld [vmem:[#allocation2] sm:$0xff]
        %v233 = vld [vmem:[#allocation2 + $0x8] sm:$0xff]
        %v235 = vsel %vm205, %v198, 0
        %v238 = vsel %vm205, %v232, 0
        %v241 = vsel %vm205, %v233, 0
        %243 = vmatprep.subr.mxu0 0.0
        %244 = vmatpush1.xpose.msra.mxu0 %v238
        %245 = vmatprep.subr.mxu0 0.0
        %246 = vmatpush1.xpose.msra.mxu0 %v241
        %247 = vmatprep.subr.mxu0 0.0
        %248 = vmatpush1.xpose.msra.mxu0 0.0
        %249 = vmatprep.subr.mxu0 0.0
        %250 = vmatpush1.xpose.msra.mxu0 0.0
        %251 = vmatprep.subr.mxu0 0.0
        %252 = vmatpush1.xpose.msra.mxu0 0.0
        %253 = vmatprep.subr.mxu0 0.0
        %254 = vmatpush1.xpose.msra.mxu0 0.0
        %255 = vmatprep.subr.mxu0 0.0
        %256 = vmatpush1.xpose.msra.mxu0 0.0
        %257 = vmatprep.subr.mxu0 0.0
        %258 = vmatpush1.xpose.msra.mxu0 0.0
        %259 = vmatprep.subr.mxu0 0.0
        %260 = vmatpush1.xpose.msra.mxu0 0.0
        %261 = vmatprep.subr.mxu0 0.0
        %262 = vmatpush1.xpose.msra.mxu0 0.0
        %263 = vmatprep.subr.mxu0 0.0
        %264 = vmatpush1.xpose.msra.mxu0 0.0
        %265 = vmatprep.subr.mxu0 0.0
        %266 = vmatpush1.xpose.msra.mxu0 0.0
        %267 = vmatprep.subr.mxu0 0.0
        %268 = vmatpush1.xpose.msra.mxu0 0.0
        %269 = vmatprep.subr.mxu0 0.0
        %270 = vmatpush1.xpose.msra.mxu0 0.0
        %271 = vmatprep.subr.mxu0 0.0
        %272 = vmatpush1.xpose.msra.mxu0 0.0
        %273 = vmatprep.subr.mxu0 0.0
        %274 = vmatpush1.xpose.msra.mxu0 0.0
        %275 = vmatprep.subr.mxu0 0.0
        %276 = vmatpush1.xpose.msra.mxu0 0.0
        %277 = vmatprep.subr.mxu0 0.0
        %278 = vmatpush1.xpose.msra.mxu0 0.0
        %279 = vmatprep.subr.mxu0 0.0
        %280 = vmatpush1.xpose.msra.mxu0 0.0
        %281 = vmatprep.subr.mxu0 0.0
        %282 = vmatpush1.xpose.msra.mxu0 0.0
        %283 = vmatprep.subr.mxu0 0.0
        %284 = vmatpush1.xpose.msra.mxu0 0.0
        %285 = vmatprep.subr.mxu0 0.0
        %286 = vmatpush1.xpose.msra.mxu0 0.0
        %287 = vmatprep.subr.mxu0 0.0
        %288 = vmatpush1.xpose.msra.mxu0 0.0
        %289 = vmatprep.subr.mxu0 0.0
        %290 = vmatpush1.xpose.msra.mxu0 0.0
        %291 = vmatprep.subr.mxu0 0.0
        %292 = vmatpush1.xpose.msra.mxu0 0.0
        %293 = vmatprep.subr.mxu0 0.0
        %294 = vmatpush1.xpose.msra.mxu0 0.0
        %295 = vmatprep.subr.mxu0 0.0
        %296 = vmatpush1.xpose.msra.mxu0 0.0
        %297 = vmatprep.subr.mxu0 0.0
        %298 = vmatpush1.xpose.msra.mxu0 0.0
        %299 = vmatprep.subr.mxu0 0.0
        %300 = vmatpush1.xpose.msra.mxu0 0.0
        %301 = vmatprep.subr.mxu0 0.0
        %302 = vmatpush1.xpose.msra.mxu0 0.0
        %303 = vmatprep.subr.mxu0 0.0
        %304 = vmatpush1.xpose.msra.mxu0 0.0
        %305 = vmatprep.subr.mxu0 0.0
        %306 = vmatpush1.xpose.msra.mxu0 0.0
        %307 = vmatprep.mubr.f32.mxu0 0.0
        %308 = vmatmul.mubr.f32.gmra.mrb[0].mxu0 %v235
        %v309 = vpop.f32.mrb[0].mxu0
        %v310 = vadd.f32 0.0, %v309
        %v311 = vpop.f32.mrb[0].mxu0
        %312 = vdwg.mxu0
        %v313 = vsel %vm204, 1, 0
        %vm314 = vcmp.eq.s32.totalorder %v313, 1
        %v315 = vsel %vm314, %v310, 0.0
        %v316 = vmul.f32 %v315, 1.442695
        %v317 = vpow.pop %v316
        %v318 = vadd.f32 %v317, 1e-05
        %320 = vrot.lane.b32.xlu0 %v318, 120
        %v321 = vpop.permute.xlu0 %320
        %v323 = vrcp.pop %v321
        %v324 = vmul.f32 %v318, %v323
        %v325 = vlog2.pop %v324
        %v326 = vmul.f32 %v325, 0.6931472
        %v327 = vand.u32 2147483647, %v326
        %vm328 = vcmask 64512
        %v329 = vsel %vm328, %v327, 0.0
        %330 = vadd.xlane.f32.xlu0 %v329
        %v331 = vpop.xlane.xlu0 %330
        %v332 = vrot.slane %v331, 4
        %v333 = vadd.f32 %v331, %v332
        %v334 = vrot.slane %v333, 2
        %v335 = vadd.f32 %v333, %v334
        %v336 = vrot.slane %v335, 1
        %v337 = vadd.f32 %v335, %v336
        %s338 = vtos %v337
        %v339 = vlaneseq
        %v340 = vand.u32 %v339, 127
        %vm341 = vcmp.eq.s32.totalorder %v340, 0
        %vm342 = vcmp.eq.s32.totalorder %v340, 1
        %v343 = vstv %s338
        %v344 = vsel %vm342, %v343, 0.0
        %v345 = vstv %s231
        %v346 = vsel %vm341, %v345, %v344
        %347 = vst [vmem:[%s189] sm:$0xff] %v346
        %s348 = sand.u32 %s99, 1
        %s349 = scalar_lea.sflag [#allocation4], %s348
        %s350 = sand.u32 %s99, 1
        %s351 = smul.addr %s350, 8
        %s352 = scalar_lea.vmem [#allocation5], %s351
        // Predicated region
        $region37: #{tpu_custom_call.1} parent=31 // pred_check
          %p353 = pneg %p109
        $region38: #{tpu_custom_call.1} parent=31 // pred_check_branch
          %355 = sbr.rel (%p353) target = $region40
        $region39: #{tpu_custom_call.1} parent=31 // pred_region
          %s357 = ssub.s32 128, 128
          %358 = vsyncadd %s349, %s357
          %s359 = smul.addr %s18, 128
          %s360 = scalar_lea.hbm %s3, %s359
          %s362 = sshll.u32 %s352, 4
          %s363 = int_to_ptr.vmem [resolvable:$true] %s362
          %365 = dma.vmem_to_hbm [thread:$0]  %s363, 128, %s360, %s349
        $region40: #{tpu_custom_call.1} parent=31 // pred_fallthru
          _
      $region32: #{tpu_custom_call.1} parent=5 // pred_fallthru
        _
      %p366 = scmp.le.s32.totalorder 2, %s13
      // Predicated region
      $region41: #{tpu_custom_call.1} parent=5 // pred_check
        %p367 = pneg %p366
      $region42: #{tpu_custom_call.1} parent=5 // pred_check_branch
        %369 = sbr.rel (%p367) target = $region44
      $region43: #{tpu_custom_call.1} parent=5 // pred_region
        %s370 = ssub.s32 %s13, 2
        // Predicated region
        $region45: #{tpu_custom_call.1} parent=43 // pred_check
          %p371 = pneg %p115
        $region46: #{tpu_custom_call.1} parent=43 // pred_check_branch
          %373 = sbr.rel (%p371) target = $region48
        $region47: #{tpu_custom_call.1} parent=43 // pred_region
          %s374 = sand.u32 %s100, 1
          %s375 = scalar_lea.sflag [#allocation4], %s374
          %s376 = sand.u32 %s100, 1
          %s377 = smul.addr %s376, 8
          %s378 = scalar_lea.vmem [#allocation5], %s377
          %379 = dma.done %s375, 128
        $region48: #{tpu_custom_call.1} parent=43 // pred_fallthru
          _
      $region44: #{tpu_custom_call.1} parent=5 // pred_fallthru
        _
    $region6: #{tpu_custom_call.1} parent=1 // loop_footer
      %s17 = sadd.s32 1, %s13
    $region7: #{tpu_custom_call.1} parent=1 // loop_footer_branch
      %12 = sbr.rel target = $region3
    $region8: #{tpu_custom_call.1} parent=1 // loop_exit
      _
    %380 = vsyncpa [#allocation3], 1
    %s381 = scalar_lea.sflag [#allocation3], 1
    %382 = vsyncpa %s381, 1
    %383 = vsyncpa [#allocation4], 1
    %s384 = scalar_lea.sflag [#allocation4], 1
    %385 = vsyncpa %s384, 1

// kernel: tpu_custom_call.1
$region0: #{tpu_custom_call.1}
  #allocation0 [shape = 'u32[]', space=smem, size = 0x4, offset = 0x4, fixed_abs, tag = 'smem constant byte address 0x4 - core index']
  #allocation1 [shape = 'u32[144,128]{1,0:T(1,128)}', space=vmem, size = 0x12000, scoped, tag = 'internal scratch']
  %s0 = inlined_call_operand.vmem [shape: f32[18,32], index: 0, kind: input, shape index: {}]
  %s1 = inlined_call_operand.vmem [shape: f32[18,1], index: 1, kind: input, shape index: {}]
  %s2 = inlined_call_operand.hbm [shape: f32[16,32], index: 2, kind: input, shape index: {}]
  %s3 = inlined_call_operand.hbm [shape: f32[3,8,128], index: 3, kind: output, shape index: {}]
  %s4 = sld [smem:[#allocation0]]
  $region49: #{tpu_custom_call.1} parent=0
    _
  %s6 = ssub.s32 1, %s4
  %s7 = scalar_select 0, %s6, %s4
  $region1: #{tpu_custom_call.1} parent=0
    #allocation2 [shape = 'u8[8192]{0}', space=vmem, size = 0x2000, scoped, tag = 'input window, operand 2, single buffered']
    #allocation3 [shape = 's32[2]{0}', space=sflag, size = 0x8, scoped, tag = 'scoped memory for tpu_custom_call.1']
    #allocation4 [shape = 's32[2]{0}', space=sflag, size = 0x8, scoped, tag = 'scoped memory for tpu_custom_call.1']
    #allocation5 [shape = 'u8[8192]{0}', space=vmem, size = 0x2000, scoped, tag = 'output window, operand 0']
    %8 = vsyncpa [#allocation3], 0
    %9 = vsyncpa [#allocation4], 0
    %s10 = scalar_lea.sflag [#allocation4], 1
    %11 = vsyncpa %s10, 0
    loop: start=0, step=1, limit=5
    $region2: #{tpu_custom_call.1} parent=1 // loop_pre_header
      _
    $region3: #{tpu_custom_call.1} parent=1 // loop_header
      %s13 = sphi 0, %s17
      %p14 = scmp.ge.s32.totalorder %s13, 5
      %s23 = sphi 0, %s25
      %s26 = sphi 0, %s23
      %s27 = sphi 0, %s26
      %s43 = sphi 0, %s27
      %s49 = sphi 0, %s51
      %s52 = sphi 0, %s49
      %s53 = sphi 0, %s52
      %s69 = sphi 0, %s53
      %s73 = sphi 0, %s73
      %s75 = sphi 0, %s73
      %s76 = sphi 0, %s75
      %s90 = sphi 0, %s76
      %s96 = sphi 0, %s98
      %s99 = sphi 0, %s96
      %s100 = sphi 0, %s99
      %s116 = sphi 0, %s100
    $region4: #{tpu_custom_call.1} parent=1 // loop_header_branch
      %16 = sbr.rel (%p14) target = $region8
    $region5: #{tpu_custom_call.1} parent=1 // loop_body
      %s18 = ssub.s32 %s13, 1
      %s19 = ssub.s32 %s13, 2
      %s20 = sadd.s32 %s13, 1
      %s21 = ssub.s32 %s13, %s20
      %p22 = scmp.eq.s32.totalorder %s21, 0
      %s24 = sadd.s32 %s23, 1
      %s25 = scalar_select %p22, %s23, %s24
      %p28 = pneg %p22
      %p29 = scmp.eq.s32.totalorder %s13, 2
      %p30 = por %p28, %p29
      %p31 = scmp.ne.s32.totalorder %s23, %s26
      %p32 = scmp.eq.s32.totalorder %s13, 0
      %p33 = por %p31, %p32
      %p34 = scmp.ne.s32.totalorder %s23, %s26
      %p35 = scmp.eq.s32.totalorder %s18, 2
      %p36 = por %p34, %p35
      %p37 = scmp.ne.s32.totalorder %s26, %s27
      %p38 = scmp.eq.s32.totalorder %s18, 0
      %p39 = por %p37, %p38
      %p40 = scmp.ne.s32.totalorder %s26, %s27
      %p41 = scmp.eq.s32.totalorder %s19, 2
      %p42 = por %p40, %p41
      %p44 = scmp.ne.s32.totalorder %s27, %s43
      %p45 = scmp.eq.s32.totalorder %s19, 0
      %p46 = por %p44, %p45
      %s47 = ssub.s32 %s13, %s20
      %p48 = scmp.eq.s32.totalorder %s47, 0
      %s50 = sadd.s32 %s49, 1
      %s51 = scalar_select %p48, %s49, %s50
      %p54 = pneg %p48
      %p55 = scmp.eq.s32.totalorder %s13, 2
      %p56 = por %p54, %p55
      %p57 = scmp.ne.s32.totalorder %s49, %s52
      %p58 = scmp.eq.s32.totalorder %s13, 0
      %p59 = por %p57, %p58
      %p60 = scmp.ne.s32.totalorder %s49, %s52
      %p61 = scmp.eq.s32.totalorder %s18, 2
      %p62 = por %p60, %p61
      %p63 = scmp.ne.s32.totalorder %s52, %s53
      %p64 = scmp.eq.s32.totalorder %s18, 0
      %p65 = por %p63, %p64
      %p66 = scmp.ne.s32.totalorder %s52, %s53
      %p67 = scmp.eq.s32.totalorder %s19, 2
      %p68 = por %p66, %p67
      %p70 = scmp.ne.s32.totalorder %s53, %s69
      %p71 = scmp.eq.s32.totalorder %s19, 0
      %p72 = por %p70, %p71
      %s74 = sadd.s32 %s73, 1
      %p77 = scmp.eq.s32.totalorder %s13, 2
      %p78 = scmp.ne.s32.totalorder %s73, %s75
      %p79 = scmp.eq.s32.totalorder %s13, 0
      %p80 = por %p78, %p79
      %p81 = scmp.ne.s32.totalorder %s73, %s75
      %p82 = scmp.eq.s32.totalorder %s18, 2
      %p83 = por %p81, %p82
      %p84 = scmp.ne.s32.totalorder %s75, %s76
      %p85 = scmp.eq.s32.totalorder %s18, 0
      %p86 = por %p84, %p85
      %p87 = scmp.ne.s32.totalorder %s75, %s76
      %p88 = scmp.eq.s32.totalorder %s19, 2
      %p89 = por %p87, %p88
      %p91 = scmp.ne.s32.totalorder %s76, %s90
      %p92 = scmp.eq.s32.totalorder %s19, 0
      %p93 = por %p91, %p92
      %s94 = ssub.s32 %s13, %s20
      %p95 = scmp.eq.s32.totalorder %s94, 0
      %s97 = sadd.s32 %s96, 1
      %s98 = scalar_select %p95, %s96, %s97
      %p101 = pneg %p95
      %p102 = scmp.eq.s32.totalorder %s13, 2
      %p103 = por %p101, %p102
      %p104 = scmp.ne.s32.totalorder %s96, %s99
      %p105 = scmp.eq.s32.totalorder %s13, 0
      %p106 = por %p104, %p105
      %p107 = scmp.ne.s32.totalorder %s96, %s99
      %p108 = scmp.eq.s32.totalorder %s18, 2
      %p109 = por %p107, %p108
      %p110 = scmp.ne.s32.totalorder %s99, %s100
      %p111 = scmp.eq.s32.totalorder %s18, 0
      %p112 = por %p110, %p111
      %p113 = scmp.ne.s32.totalorder %s99, %s100
      %p114 = scmp.eq.s32.totalorder %s19, 2
      %p115 = por %p113, %p114
      %p117 = scmp.ne.s32.totalorder %s100, %s116
      %p118 = scmp.eq.s32.totalorder %s19, 0
      %p119 = por %p117, %p118
      %p120 = scmp.le.s32.totalorder 1, %s13
      %p121 = scmp.lt.s32.totalorder %s13, 4
      %p122 = pnand %p120, %p121
      %p123 = pneg %p122
      // Predicated region
      $region9: #{tpu_custom_call.1} parent=5 // pred_check
        _
      $region10: #{tpu_custom_call.1} parent=5 // pred_check_branch
        %125 = sbr.rel (%p122) target = $region12
      $region11: #{tpu_custom_call.1} parent=5 // pred_region
        %s126 = ssub.s32 %s13, 1
        // Predicated region
        $region13: #{tpu_custom_call.1} parent=11 // pred_check
          %p127 = pneg %p86
        $region14: #{tpu_custom_call.1} parent=11 // pred_check_branch
          %129 = sbr.rel (%p127) target = $region16
        $region15: #{tpu_custom_call.1} parent=11 // pred_region
          %s131 = ssub.s32 256, 256
          %132 = vsyncadd [#allocation3], %s131
          %s133 = sshll.u32 [#allocation2], 4
          %s134 = int_to_ptr.vmem [resolvable:$true] %s133
          %139 = dma.hbm_to_vmem [thread:$0]  %s2, 256, %s134, [#allocation3], 128, 128, 8
        $region16: #{tpu_custom_call.1} parent=11 // pred_fallthru
          _
      $region12: #{tpu_custom_call.1} parent=5 // pred_fallthru
        _
      %p140 = scmp.lt.s32.totalorder %s13, 3
      // Predicated region
      $region17: #{tpu_custom_call.1} parent=5 // pred_check
        %p141 = pneg %p140
      $region18: #{tpu_custom_call.1} parent=5 // pred_check_branch
        %143 = sbr.rel (%p141) target = $region20
      $region19: #{tpu_custom_call.1} parent=5 // pred_region
        // Predicated region
        $region21: #{tpu_custom_call.1} parent=19 // pred_check
          %p144 = pneg %p33
        $region22: #{tpu_custom_call.1} parent=19 // pred_check_branch
          %146 = sbr.rel (%p144) target = $region24
        $region23: #{tpu_custom_call.1} parent=19 // pred_region
          %p147 = scmp.lt.s32.totalorder %s13, 2
          %s148 = scalar_select %p147, %s13, 2
          %s149 = smul.addr %s148, 8
          %s150 = scalar_lea.vmem %s0, %s149
        $region24: #{tpu_custom_call.1} parent=19 // pred_fallthru
          _
        // Predicated region
        $region25: #{tpu_custom_call.1} parent=19 // pred_check
          %p151 = pneg %p59
        $region26: #{tpu_custom_call.1} parent=19 // pred_check_branch
          %153 = sbr.rel (%p151) target = $region28
        $region27: #{tpu_custom_call.1} parent=19 // pred_region
          %p154 = scmp.lt.s32.totalorder %s13, 2
          %s155 = scalar_select %p154, %s13, 2
          %s156 = smul.addr %s155, 8
          %s157 = scalar_lea.vmem %s1, %s156
        $region28: #{tpu_custom_call.1} parent=19 // pred_fallthru
          _
      $region20: #{tpu_custom_call.1} parent=5 // pred_fallthru
        _
      %p158 = scmp.le.s32.totalorder 1, %s13
      %p159 = scmp.lt.s32.totalorder %s13, 4
      %p160 = pnand %p158, %p159
      %p161 = pneg %p160
      // Predicated region
      $region29: #{tpu_custom_call.1} parent=5 // pred_check
        _
      $region30: #{tpu_custom_call.1} parent=5 // pred_check_branch
        %163 = sbr.rel (%p160) target = $region32
      $region31: #{tpu_custom_call.1} parent=5 // pred_region
        %s164 = ssub.s32 %s13, 1
        // Predicated region
        $region33: #{tpu_custom_call.1} parent=31 // pred_check
          %p165 = pneg %p86
        $region34: #{tpu_custom_call.1} parent=31 // pred_check_branch
          %167 = sbr.rel (%p165) target = $region36
        $region35: #{tpu_custom_call.1} parent=31 // pred_region
          %168 = dma.done [#allocation3], 256
        $region36: #{tpu_custom_call.1} parent=31 // pred_fallthru
          _
        %p169 = scmp.lt.s32.totalorder %s18, 2
        %s170 = scalar_select %p169, %s18, 2
        %s171 = smul.addr %s170, 8
        %s172 = scalar_lea.vmem %s0, %s171
        %p173 = pneg %p39
        %p174 = pneg %p36
        %p175 = scmp.lt.s32.totalorder %s18, 2
        %s176 = scalar_select %p175, %s18, 2
        %s177 = smul.addr %s176, 8
        %s178 = scalar_lea.vmem %s1, %s177
        %p179 = pneg %p65
        %p180 = pneg %p62
        %p181 = pneg %p86
        %p182 = pneg %p83
        %p183 = pneg %p112
        %p184 = pneg %p109
        %s185 = sand.u32 %s99, 1
        %s186 = scalar_lea.sflag [#allocation4], %s185
        %s187 = sand.u32 %s99, 1
        %s188 = smul.addr %s187, 8
        %s189 = scalar_lea.vmem [#allocation5], %s188
        %p190 = scmp.lt.s32.totalorder %s18, 2
        %s191 = scalar_select %p190, %s18, 2
        %s192 = smul.addr %s191, 8
        %s193 = scalar_lea.vmem %s0, %s192
        %p194 = scmp.lt.s32.totalorder %s18, 2
        %s195 = scalar_select %p194, %s18, 2
        %s196 = smul.addr %s195, 8
        %s197 = scalar_lea.vmem %s1, %s196
        %v198 = vld [vmem:[%s193] sm:$0xff]
        %v199 = vlaneseq
        %v200 = vshrl.u32 %v199, 7
        %s201 = smul.u32 %s18, 8
        %v202 = vstv %s201
        %v203 = vadd.s32 %v200, %v202
        %vm204 = vcmp.lt.s32.totalorder %v203, 18
        %vm205 = vcmask 261120
        %v206 = vsel %vm205, %v198, -inf
        %207 = vmax.xlane.f32.xlu0 %v206
        %v208 = vpop.xlane.xlu0 %207
        %v209 = vsub.f32 %v198, %v208
        %v210 = vmul.f32 %v209, 1.442695
        %v211 = vpow.pop %v210
        %v212 = vsel %vm205, %v211, 0.0
        %213 = vadd.xlane.f32.xlu0 %v212
        %v214 = vpop.xlane.xlu0 %213
        %v215 = vlog2.pop %v214
        %v216 = vmul.f32 %v215, 0.6931472
        %v217 = vadd.f32 %v216, %v208
        %v218 = vld [vmem:[%s197] sm:$0xff]
        %v219 = vsub.f32 %v217, %v218
        %v220 = vsel %vm204, %v219, 0.0
        %vm221 = vcmask 7168
        %v222 = vsel %vm221, %v220, 0.0
        %223 = vadd.xlane.f32.xlu0 %v222
        %v224 = vpop.xlane.xlu0 %223
        %v225 = vrot.slane %v224, 4
        %v226 = vadd.f32 %v224, %v225
        %v227 = vrot.slane %v226, 2
        %v228 = vadd.f32 %v226, %v227
        %v229 = vrot.slane %v228, 1
        %v230 = vadd.f32 %v228, %v229
        %s231 = vtos %v230
        %v232 = vld [vmem:[#allocation2] sm:$0xff]
        %v233 = vld [vmem:[#allocation2 + $0x8] sm:$0xff]
        %v235 = vsel %vm205, %v198, 0
        %v238 = vsel %vm205, %v232, 0
        %v241 = vsel %vm205, %v233, 0
        %243 = vmatprep.subr.mxu0 0.0
        %244 = vmatpush1.xpose.msra.mxu0 %v238
        %245 = vmatprep.subr.mxu0 0.0
        %246 = vmatpush1.xpose.msra.mxu0 %v241
        %247 = vmatprep.subr.mxu0 0.0
        %248 = vmatpush1.xpose.msra.mxu0 0.0
        %249 = vmatprep.subr.mxu0 0.0
        %250 = vmatpush1.xpose.msra.mxu0 0.0
        %251 = vmatprep.subr.mxu0 0.0
        %252 = vmatpush1.xpose.msra.mxu0 0.0
        %253 = vmatprep.subr.mxu0 0.0
        %254 = vmatpush1.xpose.msra.mxu0 0.0
        %255 = vmatprep.subr.mxu0 0.0
        %256 = vmatpush1.xpose.msra.mxu0 0.0
        %257 = vmatprep.subr.mxu0 0.0
        %258 = vmatpush1.xpose.msra.mxu0 0.0
        %259 = vmatprep.subr.mxu0 0.0
        %260 = vmatpush1.xpose.msra.mxu0 0.0
        %261 = vmatprep.subr.mxu0 0.0
        %262 = vmatpush1.xpose.msra.mxu0 0.0
        %263 = vmatprep.subr.mxu0 0.0
        %264 = vmatpush1.xpose.msra.mxu0 0.0
        %265 = vmatprep.subr.mxu0 0.0
        %266 = vmatpush1.xpose.msra.mxu0 0.0
        %267 = vmatprep.subr.mxu0 0.0
        %268 = vmatpush1.xpose.msra.mxu0 0.0
        %269 = vmatprep.subr.mxu0 0.0
        %270 = vmatpush1.xpose.msra.mxu0 0.0
        %271 = vmatprep.subr.mxu0 0.0
        %272 = vmatpush1.xpose.msra.mxu0 0.0
        %273 = vmatprep.subr.mxu0 0.0
        %274 = vmatpush1.xpose.msra.mxu0 0.0
        %275 = vmatprep.subr.mxu0 0.0
        %276 = vmatpush1.xpose.msra.mxu0 0.0
        %277 = vmatprep.subr.mxu0 0.0
        %278 = vmatpush1.xpose.msra.mxu0 0.0
        %279 = vmatprep.subr.mxu0 0.0
        %280 = vmatpush1.xpose.msra.mxu0 0.0
        %281 = vmatprep.subr.mxu0 0.0
        %282 = vmatpush1.xpose.msra.mxu0 0.0
        %283 = vmatprep.subr.mxu0 0.0
        %284 = vmatpush1.xpose.msra.mxu0 0.0
        %285 = vmatprep.subr.mxu0 0.0
        %286 = vmatpush1.xpose.msra.mxu0 0.0
        %287 = vmatprep.subr.mxu0 0.0
        %288 = vmatpush1.xpose.msra.mxu0 0.0
        %289 = vmatprep.subr.mxu0 0.0
        %290 = vmatpush1.xpose.msra.mxu0 0.0
        %291 = vmatprep.subr.mxu0 0.0
        %292 = vmatpush1.xpose.msra.mxu0 0.0
        %293 = vmatprep.subr.mxu0 0.0
        %294 = vmatpush1.xpose.msra.mxu0 0.0
        %295 = vmatprep.subr.mxu0 0.0
        %296 = vmatpush1.xpose.msra.mxu0 0.0
        %297 = vmatprep.subr.mxu0 0.0
        %298 = vmatpush1.xpose.msra.mxu0 0.0
        %299 = vmatprep.subr.mxu0 0.0
        %300 = vmatpush1.xpose.msra.mxu0 0.0
        %301 = vmatprep.subr.mxu0 0.0
        %302 = vmatpush1.xpose.msra.mxu0 0.0
        %303 = vmatprep.subr.mxu0 0.0
        %304 = vmatpush1.xpose.msra.mxu0 0.0
        %305 = vmatprep.subr.mxu0 0.0
        %306 = vmatpush1.xpose.msra.mxu0 0.0
        %307 = vmatprep.mubr.f32.mxu0 0.0
        %308 = vmatmul.mubr.f32.gmra.mrb[0].mxu0 %v235
        %v309 = vpop.f32.mrb[0].mxu0
        %v310 = vadd.f32 0.0, %v309
        %v311 = vpop.f32.mrb[0].mxu0
        %312 = vdwg.mxu0
        %v313 = vsel %vm204, 1, 0
        %vm314 = vcmp.eq.s32.totalorder %v313, 1
        %v315 = vsel %vm314, %v310, 0.0
        %v316 = vmul.f32 %v315, 1.442695
        %v317 = vpow.pop %v316
        %v318 = vadd.f32 %v317, 1e-05
        %320 = vrot.lane.b32.xlu0 %v318, 120
        %v321 = vpop.permute.xlu0 %320
        %v323 = vrcp.pop %v321
        %v324 = vmul.f32 %v318, %v323
        %v325 = vlog2.pop %v324
        %v326 = vmul.f32 %v325, 0.6931472
        %v327 = vand.u32 2147483647, %v326
        %vm328 = vcmask 64512
        %v329 = vsel %vm328, %v327, 0.0
        %330 = vadd.xlane.f32.xlu0 %v329
        %v331 = vpop.xlane.xlu0 %330
        %v332 = vrot.slane %v331, 4
        %v333 = vadd.f32 %v331, %v332
        %v334 = vrot.slane %v333, 2
        %v335 = vadd.f32 %v333, %v334
        %v336 = vrot.slane %v335, 1
        %v337 = vadd.f32 %v335, %v336
        %s338 = vtos %v337
        %v339 = vlaneseq
        %v340 = vand.u32 %v339, 127
        %vm341 = vcmp.eq.s32.totalorder %v340, 0
        %vm342 = vcmp.eq.s32.totalorder %v340, 1
        %v343 = vstv %s338
        %v344 = vsel %vm342, %v343, 0.0
        %v345 = vstv %s231
        %v346 = vsel %vm341, %v345, %v344
        %347 = vst [vmem:[%s189] sm:$0xff] %v346
        %s348 = sand.u32 %s99, 1
        %s349 = scalar_lea.sflag [#allocation4], %s348
        %s350 = sand.u32 %s99, 1
        %s351 = smul.addr %s350, 8
        %s352 = scalar_lea.vmem [#allocation5], %s351
        // Predicated region
        $region37: #{tpu_custom_call.1} parent=31 // pred_check
          %p353 = pneg %p109
        $region38: #{tpu_custom_call.1} parent=31 // pred_check_branch
          %355 = sbr.rel (%p353) target = $region40
        $region39: #{tpu_custom_call.1} parent=31 // pred_region
          %s357 = ssub.s32 128, 128
          %358 = vsyncadd %s349, %s357
          %s359 = smul.addr %s18, 128
          %s360 = scalar_lea.hbm %s3, %s359
          %s362 = sshll.u32 %s352, 4
          %s363 = int_to_ptr.vmem [resolvable:$true] %s362
          %365 = dma.vmem_to_hbm [thread:$0]  %s363, 128, %s360, %s349
        $region40: #{tpu_custom_call.1} parent=31 // pred_fallthru
          _
      $region32: #{tpu_custom_call.1} parent=5 // pred_fallthru
        _
      %p366 = scmp.le.s32.totalorder 2, %s13
      // Predicated region
      $region41: #{tpu_custom_call.1} parent=5 // pred_check
        %p367 = pneg %p366
      $region42: #{tpu_custom_call.1} parent=5 // pred_check_branch
        %369 = sbr.rel (%p367) target = $region44
      $region43: #{tpu_custom_call.1} parent=5 // pred_region
        %s370 = ssub.s32 %s13, 2
        // Predicated region
        $region45: #{tpu_custom_call.1} parent=43 // pred_check
          %p371 = pneg %p115
        $region46: #{tpu_custom_call.1} parent=43 // pred_check_branch
          %373 = sbr.rel (%p371) target = $region48
        $region47: #{tpu_custom_call.1} parent=43 // pred_region
          %s374 = sand.u32 %s100, 1
          %s375 = scalar_lea.sflag [#allocation4], %s374
          %s376 = sand.u32 %s100, 1
          %s377 = smul.addr %s376, 8
          %s378 = scalar_lea.vmem [#allocation5], %s377
          %379 = dma.done %s375, 128
        $region48: #{tpu_custom_call.1} parent=43 // pred_fallthru
          _
      $region44: #{tpu_custom_call.1} parent=5 // pred_fallthru
        _
    $region6: #{tpu_custom_call.1} parent=1 // loop_footer
      %s17 = sadd.s32 1, %s13
    $region7: #{tpu_custom_call.1} parent=1 // loop_footer_branch
      %12 = sbr.rel target = $region3
    $region8: #{tpu_custom_call.1} parent=1 // loop_exit
      _
    %380 = vsyncpa [#allocation3], 1
    %s381 = scalar_lea.sflag [#allocation3], 1
    %382 = vsyncpa %s381, 1
    %383 = vsyncpa [#allocation4], 1
    %s384 = scalar_lea.sflag [#allocation4], 1
    %385 = vsyncpa %s384, 1

</llo_original>
